<compile_context>
chip_gen: v5e
topology: v5e:2x2
jax: 0.10.0
libtpu: 0.0.40
codegen_flags: <defaults>
</compile_context>

<pallas_src>
import jax
import jax.numpy as jnp
from jax.experimental import pallas as pl
from jax.experimental.pallas import tpu as pltpu

LANE = 128        # vreg lane width (fast axis)
SUBLANE_F32 = 8   # f32 sublane packing


def _round_up(x, m):
    return (x + m - 1) // m * m


def anaphora_head_kernel(cls_ref, w_ref, b_ref, o_ref):
    # Single fused GEMM on the MXU: (bt, D) x (D, C_pad), f32 accumulation.
    acc = jnp.dot(cls_ref[...], w_ref[...], preferred_element_type=jnp.float32)
    # Lane-dense f32 bias-add epilogue (VPU), then one unmasked full-vreg store.
    o_ref[...] = (acc + b_ref[...]).astype(o_ref.dtype)


def fuse_head_params(w_hidden, b_hidden, w_head, b_head, *, use_bf16=True):
    """Precompute ONCE (parameter-load time) the fused, lane-padded head params.

    hidden(x) = x @ W_hidden + b_hidden ; head(v) = v @ W_head + b_head with no
    nonlinearity in between, so they fold algebraically into a single GEMM:
        W_fused = W_hidden @ W_head            (D, 2)
        b_fused = b_hidden @ W_head + b_head   (2,)
    The class dim is padded 2 -> 128 lanes so the kernel's output stores are
    unmasked and lane-dense.  (Summation order over the 300-dim hidden is
    reordered; mathematically equivalent, negligible in f32.)
    """
    D = w_hidden.shape[0]
    C = w_head.shape[1]
    op_dtype = jnp.bfloat16 if use_bf16 else jnp.float32

    w_fused = (w_hidden @ w_head).astype(jnp.float32)            # (D, C)
    b_fused = (b_hidden @ w_head + b_head).astype(jnp.float32)   # (C,)

    C_pad = _round_up(C, LANE)
    w_p = jnp.zeros((D, C_pad), op_dtype).at[:, :C].set(w_fused.astype(op_dtype))
    b_p = jnp.zeros((1, C_pad), jnp.float32).at[0, :C].set(b_fused)
    return {"w": w_p, "b": b_p, "num_classes": C, "op_dtype": op_dtype}


def bert_anaphora_head(last_hidden_state, fused, *, block_b=512):
    """Forward of the BERTAnaphora classification head.

    last_hidden_state: (B, S, D) f32 (BERT encoder output)
    fused: output of fuse_head_params()
    Returns logits (B, 2) f32.
    """
    B, S, D = last_hidden_state.shape
    w_p, b_p = fused["w"], fused["b"]
    C = fused["num_classes"]
    op_dtype = fused["op_dtype"]
    C_pad = w_p.shape[1]

    # CLS gather + MXU-operand cast in the wrapper: one strided pass over BxD
    # (written as bf16), no materialized batch padding.
    # TODO(synk): fold this gather into the kernel via a (bt, 1, D) squeezed-S
    # BlockSpec once size-1 sublane blocks lower reliably on all generations.
    cls = last_hidden_state[:, 0, :].astype(op_dtype)            # (B, D)

    # Sublane packing: 16 rows/vreg for bf16, 8 for f32.
    pack = SUBLANE_F32 * (4 // jnp.dtype(op_dtype).itemsize)

    # Big batch tiles amortize the ~0.35us/step overhead; for large B force an
    # even number of grid steps so v7x's two TensorCores split work evenly.
    steps = max(1, pl.cdiv(B, block_b))
    if steps > 1 and steps % 2:
        steps += 1
    bt = min(_round_up(B, pack), _round_up(pl.cdiv(B, steps), pack))
    grid = (pl.cdiv(B, bt),)

    out = pl.pallas_call(
        anaphora_head_kernel,
        out_shape=jax.ShapeDtypeStruct((B, C_pad), jnp.float32),
        grid=grid,
        in_specs=[
            pl.BlockSpec((bt, D), lambda i: (i, 0)),      # batch-tiled CLS rows
            pl.BlockSpec((D, C_pad), lambda i: (0, 0)),   # fused weight, resident
            pl.BlockSpec((1, C_pad), lambda i: (0, 0)),   # fused bias, resident
        ],
        out_specs=pl.BlockSpec((bt, C_pad), lambda i: (i, 0)),
        compiler_params=pltpu.CompilerParams(
            dimension_semantics=("parallel",)),           # dual-TC sharding (v7x)
    )(cls, w_p, b_p)

    return out[:, :C]


def reference_forward(last_hidden_state, w_hidden, b_hidden, w_head, b_head):
    cls = last_hidden_state[:, 0, :]
    vec = cls @ w_hidden + b_hidden
    return vec @ w_head + b_head


if __name__ == "__main__":
    key = jax.random.PRNGKey(0)
    k_h, k_w1, k_b1, k_w2, k_b2 = jax.random.split(key, 5)

    B, S, D = 2, 8, 32          # batch, seq len, embedding_dim
    HID, NCLS = 300, 2          # Linear(embedding_dim, 300), Linear(300, 2)

    # Synthetic, deterministic stand-in for bert(**tokens).last_hidden_state
    last_hidden_state = jax.random.normal(k_h, (B, S, D), dtype=jnp.float32)

    # Deterministic parameter init (kaiming-uniform-ish scale, stored (in, out))
    w_hidden = jax.random.uniform(k_w1, (D, HID), jnp.float32, -1.0, 1.0) / jnp.sqrt(D)
    b_hidden = jax.random.uniform(k_b1, (HID,), jnp.float32, -1.0, 1.0) / jnp.sqrt(D)
    w_head = jax.random.uniform(k_w2, (HID, NCLS), jnp.float32, -1.0, 1.0) / jnp.sqrt(HID)
    b_head = jax.random.uniform(k_b2, (NCLS,), jnp.float32, -1.0, 1.0) / jnp.sqrt(HID)

    # One-time parameter fusion (not part of the per-forward path).
    fused = fuse_head_params(w_hidden, b_hidden, w_head, b_head, use_bf16=True)
    fused = jax.tree_util.tree_map(
        lambda x: jax.block_until_ready(x) if isinstance(x, jax.Array) else x, fused)

    out = bert_anaphora_head(last_hidden_state, fused)
    out = jax.block_until_ready(out)

    ref = reference_forward(last_hidden_state, w_hidden, b_hidden, w_head, b_head)
    assert out.shape == (B, NCLS), out.shape
    # bf16 MXU operands + algebraic fusion -> ~1e-3 absolute deviation here.
    assert jnp.allclose(out, ref, atol=2e-2, rtol=2e-2), (out, ref)

    print("KERNEL_OK")
</pallas_src>

<mosaic_0001>
module attributes {stable_mosaic.version = 11 : i64} {
  func.func @anaphora_head_kernel(%arg0: i32, %arg1: memref<16x32xbf16, #tpu.memory_space<vmem>>, %arg2: memref<32x128xbf16, #tpu.memory_space<vmem>>, %arg3: memref<1x128xf32, #tpu.memory_space<vmem>>, %arg4: memref<16x128xf32, #tpu.memory_space<vmem>>) attributes {dimension_semantics = [#tpu.dimension_semantics<parallel>], iteration_bounds = array<i64: 1>, scalar_prefetch = 0 : i64, scratch_operands = 0 : i64, tpu.core_type = #tpu.core_type<tc>, window_params = [{transform_indices = @transform_0, window_bounds = array<i64: 16, 32>}, {pipeline_mode = #tpu.pipeline_mode<synchronous>, transform_indices = @transform_1, window_bounds = array<i64: 32, 128>}, {pipeline_mode = #tpu.pipeline_mode<synchronous>, transform_indices = @transform_2, window_bounds = array<i64: 1, 128>}, {transform_indices = @transform_3, window_bounds = array<i64: 16, 128>}]} {
    %c0 = arith.constant 0 : index
    %c0_0 = arith.constant 0 : index
    %0 = vector.load %arg1[%c0, %c0_0] : memref<16x32xbf16, #tpu.memory_space<vmem>>, vector<16x32xbf16>
    %c0_1 = arith.constant 0 : index
    %c0_2 = arith.constant 0 : index
    %1 = vector.load %arg2[%c0_1, %c0_2] : memref<32x128xbf16, #tpu.memory_space<vmem>>, vector<32x128xbf16>
    %cst = arith.constant dense<0.000000e+00> : vector<16x128xf32>
    %2 = tpu.matmul %0, %1, %cst {dimension_numbers = #tpu.dot_dimension_numbers<[1], [0], [0], [1], [0, 0, 1, 1], [], []>} : vector<16x32xbf16>, vector<32x128xbf16>, vector<16x128xf32> -> vector<16x128xf32>
    %c0_3 = arith.constant 0 : index
    %c0_4 = arith.constant 0 : index
    %3 = vector.load %arg3[%c0_3, %c0_4] : memref<1x128xf32, #tpu.memory_space<vmem>>, vector<1x128xf32>
    %4 = vector.broadcast %3 : vector<1x128xf32> to vector<16x128xf32>
    %5 = arith.addf %2, %4 : vector<16x128xf32>
    %c0_5 = arith.constant 0 : index
    %c0_6 = arith.constant 0 : index
    %6 = vector.load %arg4[%c0_5, %c0_6] : memref<16x128xf32, #tpu.memory_space<vmem>>, vector<16x128xf32>
    tpu.vector_store %arg4[%c0_5, %c0_6], %5 {strides = array<i32>} : memref<16x128xf32, #tpu.memory_space<vmem>>, vector<16x128xf32>,
    return
  }
  func.func @transform_0(%arg0: i32) -> (i32, i32) {
    %c0_i32 = arith.constant 0 : i32
    %c0_i32_0 = arith.constant 0 : i32
    return %arg0, %c0_i32 : i32, i32
  }
  func.func @transform_1(%arg0: i32) -> (i32, i32) {
    %c0_i32 = arith.constant 0 : i32
    %c0_i32_0 = arith.constant 0 : i32
    %c0_i32_1 = arith.constant 0 : i32
    return %c0_i32, %c0_i32_0 : i32, i32
  }
  func.func @transform_2(%arg0: i32) -> (i32, i32) {
    %c0_i32 = arith.constant 0 : i32
    %c0_i32_0 = arith.constant 0 : i32
    %c0_i32_1 = arith.constant 0 : i32
    return %c0_i32, %c0_i32_0 : i32, i32
  }
  func.func @transform_3(%arg0: i32) -> (i32, i32) {
    %c0_i32 = arith.constant 0 : i32
    %c0_i32_0 = arith.constant 0 : i32
    return %arg0, %c0_i32 : i32, i32
  }
}

</mosaic_0001>

<llo_original>
// kernel: tpu_custom_call.1
$region0: #{tpu_custom_call.1}
  #allocation0 [shape = 'u32[]', space=smem, size = 0x4, offset = 0x4, fixed_abs, tag = 'smem constant byte address 0x4 - core index']
  #allocation1 [shape = 'u32[72,128]{1,0:T(1,128)}', space=vmem, size = 0x9000, scoped, tag = 'internal scratch']
  %s0 = inlined_call_operand.hbm [shape: bf16[2,32], index: 0, kind: input, shape index: {}]
  %s1 = inlined_call_operand.hbm [shape: bf16[32,128], index: 1, kind: input, shape index: {}]
  %s2 = inlined_call_operand.vmem [shape: f32[1,128], index: 2, kind: input, shape index: {}]
  %s3 = inlined_call_operand.hbm [shape: f32[2,128], index: 3, kind: output, shape index: {}]
  %s4 = sld [smem:[#allocation0]]
  $region30: #{tpu_custom_call.1} parent=0
    _
  %s6 = ssub.s32 1, %s4
  %s7 = scalar_select 0, %s6, %s4
  $region1: #{tpu_custom_call.1} parent=0
    #allocation2 [shape = 'u8[4096]{0}', space=vmem, size = 0x1000, scoped, tag = 'input window, operand 0, single buffered']
    #allocation3 [shape = 's32[1]{0}', space=sflag, size = 0x4, scoped, tag = 'scoped memory for tpu_custom_call.1']
    #allocation4 [shape = 's32[1]{0}', space=sflag, size = 0x4, scoped, tag = 'scoped memory for tpu_custom_call.1']
    #allocation5 [shape = 'u8[8192]{0}', space=vmem, size = 0x2000, scoped, tag = 'input window, operand 1, single buffered']
    #allocation6 [shape = 's32[1]{0}', space=sflag, size = 0x4, scoped, tag = 'scoped memory for tpu_custom_call.1']
    #allocation7 [shape = 'u8[8192]{0}', space=vmem, size = 0x2000, scoped, tag = 'output window, operand 0, single buffered']
    %8 = vsyncpa [#allocation3], 0
    %9 = vsyncpa [#allocation6], 0
    %10 = vsyncpa [#allocation4], 0
    // Predicated region
    $region2: #{tpu_custom_call.1} parent=1 // pred_check
      _
    $region3: #{tpu_custom_call.1} parent=1 // pred_check_branch
      %12 = sbr.rel (0) target = $region5
    $region4: #{tpu_custom_call.1} parent=1 // pred_region
      %14 = vsyncadd [#allocation3], 112
      %s15 = sshll.u32 %s0, 4
      %s16 = int_to_ptr.hbm [resolvable:$true] %s15
      %s17 = sshll.u32 [#allocation2], 4
      %s18 = int_to_ptr.vmem [resolvable:$true] %s17
      %23 = dma.hbm_to_vmem [thread:$0]  %s16, 16, %s18, [#allocation3], 16, 16, 1
    $region5: #{tpu_custom_call.1} parent=1 // pred_fallthru
      _
    // Predicated region
    $region6: #{tpu_custom_call.1} parent=1 // pred_check
      _
    $region7: #{tpu_custom_call.1} parent=1 // pred_check_branch
      %25 = sbr.rel (0) target = $region9
    $region8: #{tpu_custom_call.1} parent=1 // pred_region
      %27 = vsyncadd [#allocation6], 0
      %s28 = sshll.u32 %s1, 4
      %s29 = int_to_ptr.hbm [resolvable:$true] %s28
      %s30 = sshll.u32 [#allocation5], 4
      %s31 = int_to_ptr.vmem [resolvable:$true] %s30
      %36 = dma.hbm_to_vmem [thread:$0]  %s29, 256, %s31, [#allocation6], 64, 64, 4
    $region9: #{tpu_custom_call.1} parent=1 // pred_fallthru
      _
    // Predicated region
    $region10: #{tpu_custom_call.1} parent=1 // pred_check
      _
    $region11: #{tpu_custom_call.1} parent=1 // pred_check_branch
      %38 = sbr.rel (0) target = $region13
    $region12: #{tpu_custom_call.1} parent=1 // pred_region
      _
    $region13: #{tpu_custom_call.1} parent=1 // pred_fallthru
      _
    // Predicated region
    $region14: #{tpu_custom_call.1} parent=1 // pred_check
      _
    $region15: #{tpu_custom_call.1} parent=1 // pred_check_branch
      %40 = sbr.rel (0) target = $region17
    $region16: #{tpu_custom_call.1} parent=1 // pred_region
      %42 = dma.done [#allocation3], 128
    $region17: #{tpu_custom_call.1} parent=1 // pred_fallthru
      _
    // Predicated region
    $region18: #{tpu_custom_call.1} parent=1 // pred_check
      _
    $region19: #{tpu_custom_call.1} parent=1 // pred_check_branch
      %44 = sbr.rel (0) target = $region21
    $region20: #{tpu_custom_call.1} parent=1 // pred_region
      %46 = dma.done [#allocation6], 256
    $region21: #{tpu_custom_call.1} parent=1 // pred_fallthru
      _
    %v48 = vld [vmem:[#allocation2] sm:$0x1]
    %v49 = vld [vmem:[#allocation2 + $0x1] sm:$0x1]
    %v50 = vld [vmem:[#allocation2 + $0x2] sm:$0x1]
    %v51 = vld [vmem:[#allocation2 + $0x3] sm:$0x1]
    %v52 = vld [vmem:[#allocation2 + $0x4] sm:$0x1]
    %v53 = vld [vmem:[#allocation2 + $0x5] sm:$0x1]
    %v54 = vld [vmem:[#allocation2 + $0x6] sm:$0x1]
    %v55 = vld [vmem:[#allocation2 + $0x7] sm:$0x1]
    %v56 = vld [vmem:[#allocation5] sm:$0xf]
    %v57 = vld [vmem:[#allocation5 + $0x4] sm:$0xf]
    %v58 = vld [vmem:[#allocation5 + $0x8] sm:$0xf]
    %v59 = vld [vmem:[#allocation5 + $0xc] sm:$0xf]
    %v60 = vld [vmem:[%s2] sm:$0x1]
    %v62 = vperm.slane %v60, 0
    %65 = vst [vmem:[#allocation1] ss:$9 sm:$0xff] %v48
    %s67 = scalar_lea.vmem [#allocation1], 1
    %68 = vst [vmem:[%s67] ss:$9 sm:$0xff] %v49
    %s70 = scalar_lea.vmem [#allocation1], 2
    %71 = vst [vmem:[%s70] ss:$9 sm:$0xff] %v50
    %s73 = scalar_lea.vmem [#allocation1], 3
    %74 = vst [vmem:[%s73] ss:$9 sm:$0xff] %v51
    %s76 = scalar_lea.vmem [#allocation1], 4
    %77 = vst [vmem:[%s76] ss:$9 sm:$0xff] %v52
    %s79 = scalar_lea.vmem [#allocation1], 5
    %80 = vst [vmem:[%s79] ss:$9 sm:$0xff] %v53
    %s82 = scalar_lea.vmem [#allocation1], 6
    %83 = vst [vmem:[%s82] ss:$9 sm:$0xff] %v54
    %s85 = scalar_lea.vmem [#allocation1], 7
    %86 = vst [vmem:[%s85] ss:$9 sm:$0xff] %v55
    %v87 = vld [vmem:[#allocation1] sm:$0xff]
    %v92 = vunpack.c.l.b16 %v56
    %v93 = vunpack.c.l.b16 %v57
    %v94 = vunpack.c.l.b16 %v58
    %v95 = vunpack.c.l.b16 %v59
    %v96 = vpack.c.b16 %v93, %v92
    %v97 = vpack.c.b16 %v95, %v94
    %vm100 = vcmask 261120
    %v101 = vsel %vm100, %v87, 0
    %103 = vmatpush.bf16.msra.mxu0 0
    %104 = vmatpush.bf16.msra.mxu0 0
    %105 = vmatpush.bf16.msra.mxu0 0
    %106 = vmatpush.bf16.msra.mxu0 0
    %107 = vmatpush.bf16.msra.mxu0 0
    %108 = vmatpush.bf16.msra.mxu0 0
    %109 = vmatpush.bf16.msra.mxu0 %v97
    %110 = vmatpush.bf16.msra.mxu0 %v96
    %111 = vmatmul.bf16.gmra.mxu0 %v101
    %v112 = vpop.f32.mrf.mxu0
    %v113 = vadd.f32 %v62, %v112
    %v114 = vpop.f32.mrf.mxu0
    %v115 = vadd.f32 %v62, %v114
    %116 = vdwg.mxu0
    %117 = vst [vmem:[#allocation7] sm:$0xff] %v113
    %118 = vst [vmem:[#allocation7 + $0x8] sm:$0xff] %v115
    // Predicated region
    $region22: #{tpu_custom_call.1} parent=1 // pred_check
      _
    $region23: #{tpu_custom_call.1} parent=1 // pred_check_branch
      %120 = sbr.rel (0) target = $region25
    $region24: #{tpu_custom_call.1} parent=1 // pred_region
      %122 = vsyncadd [#allocation4], 224
      %s123 = sshll.u32 [#allocation7], 4
      %s124 = int_to_ptr.vmem [resolvable:$true] %s123
      %s125 = sshll.u32 %s3, 4
      %s126 = int_to_ptr.hbm [resolvable:$true] %s125
      %131 = dma.vmem_to_hbm [thread:$0]  %s124, 32, %s126, [#allocation4], 32, 32, 2
    $region25: #{tpu_custom_call.1} parent=1 // pred_fallthru
      _
    // Predicated region
    $region26: #{tpu_custom_call.1} parent=1 // pred_check
      _
    $region27: #{tpu_custom_call.1} parent=1 // pred_check_branch
      %133 = sbr.rel (0) target = $region29
    $region28: #{tpu_custom_call.1} parent=1 // pred_region
      %135 = dma.done [#allocation4], 256
    $region29: #{tpu_custom_call.1} parent=1 // pred_fallthru
      _
    %136 = vsyncpa [#allocation3], 1
    %137 = vsyncpa [#allocation6], 1
    %138 = vsyncpa [#allocation4], 1

</llo_original>
